<compile_context>
chip_gen: v5e
topology: v5e:2x2
jax: 0.10.0
libtpu: 0.0.40
codegen_flags: <defaults>
</compile_context>

<pallas_src>
import numpy as np
import jax
import jax.numpy as jnp
from jax.experimental import pallas as pl
from jax.experimental.pallas import tpu as pltpu


def _rcp(x):
    """1/x via the EUP approx reciprocal + one Newton step (~f32 accuracy)."""
    r = pl.reciprocal(x, approx=True)
    return r * (2.0 - x * r)


# ----------------------------- Pallas kernel -------------------------------
def gcn_layer_kernel(x_ref, wf_ref, wa_ref, mask_ref, aw_ref, o_ref):
    # x_ref   : (H, N, D_in+1)        node features with a trailing ones column
    # wf_ref  : (H, D_in+1, D_out+1)  [[Wf^T, 0], [bf, 1]] (bias row + ones-gen column)
    # wa_ref  : (H, E*N, D_out+1)     [Wa | ba], the E edge types stacked on rows
    # mask_ref: (E*N, N)              neighbor membership {0,1}, same row stacking
    # aw_ref  : (H, 1, E)             raw per-edge attention weights
    # o_ref   : (H, N, D_out)
    H, N = x_ref.shape[0], x_ref.shape[1]
    EN = wa_ref.shape[1]
    E = EN // N
    D_out = o_ref.shape[2]

    mask = mask_ref[...]                                             # (E*N, N), hoisted
    neg_inf = jnp.float32(-1e30)

    for h in range(H):                                               # static unroll
        # z_aug = [x | 1] @ [[Wf^T, 0], [bf, 1]] -> (N, D_out+1); last column == 1
        z_aug = jnp.dot(x_ref[h], wf_ref[h],
                        preferred_element_type=jnp.float32)

        # All E edge-type score matrices in ONE dot:
        #   s[e*N + k, j] = Wa[e,k,:] . z[j,:] + ba[e,k]
        s = jax.lax.dot_general(wa_ref[h], z_aug, (((1,), (1,)), ((), ())),
                                preferred_element_type=jnp.float32)  # (E*N, N)
        s = jnp.where(s > 0, s, 0.2 * s)                             # LeakyReLU(0.2)

        # masked row softmax over neighbors (exact zeros off-neighborhood)
        s_m = jnp.where(mask > 0, s, neg_inf)
        p = jnp.exp(s_m - jnp.max(s_m, axis=-1, keepdims=True)) * mask
        att = p * _rcp(jnp.sum(p, axis=-1, keepdims=True))           # (E*N, N)

        # softmax over the E edge-type weights
        aw = aw_ref[h]                                               # (1, E)
        aw_e = jnp.exp(aw - jnp.max(aw, axis=-1, keepdims=True))
        aw_sm = aw_e * _rcp(jnp.sum(aw_e, axis=-1, keepdims=True))   # (1, E)

        # alpha = sum_e aw_sm[e] * att_e   (start from edge 0, no zeros init)
        alpha = att[0:N, :] * aw_sm[0:1, 0:1]
        for e in range(1, E):
            alpha = alpha + att[e * N:(e + 1) * N, :] * aw_sm[0:1, e:e + 1]

        # re-mask + row softmax
        alpha = jnp.where(alpha > 0, alpha, jnp.float32(-9e15))
        a_e = jnp.exp(alpha - jnp.max(alpha, axis=-1, keepdims=True))
        alpha = a_e * _rcp(jnp.sum(a_e, axis=-1, keepdims=True))     # (N, N)

        out_h = jnp.dot(alpha, z_aug[:, :D_out],
                        preferred_element_type=jnp.float32)          # (N, D_out)
        o_ref[h] = jnp.maximum(out_h, 0.0).astype(o_ref.dtype)       # act = ReLU


# ------------------------------- wrapper ------------------------------------
def gcn_layer(x, adj, wf_t, bf, wa, ba, mask, att_w):
    H, N, D_in = x.shape
    D_out = wf_t.shape[-1]
    E = mask.shape[0]
    f32 = jnp.float32

    # ---- fold biases into the weights so the kernel sees few, dense tiles ----
    # [x | 1]
    x_aug = jnp.concatenate([x, jnp.ones((H, N, 1), f32)], axis=-1)      # (H,N,D_in+1)
    # [[Wf^T, 0], [bf, 1]]  ->  z_aug = x_aug @ wf_pack has a trailing ones column
    ones_col = jnp.concatenate([jnp.zeros((H, D_in, 1), f32),
                                jnp.ones((H, 1, 1), f32)], axis=1)       # (H,D_in+1,1)
    wf_pack = jnp.concatenate(
        [jnp.concatenate([wf_t, bf], axis=1), ones_col], axis=-1)        # (H,D_in+1,D_out+1)
    # [Wa | ba], edge types stacked on rows
    wa_pack = jnp.concatenate([wa, ba], axis=-1).reshape(H, E * N, D_out + 1)
    mask2d = mask.reshape(E * N, N)

    out = pl.pallas_call(
        gcn_layer_kernel,
        out_shape=jax.ShapeDtypeStruct((H, N, D_out), f32),
        grid_spec=pltpu.PrefetchScalarGridSpec(
            num_scalar_prefetch=0,
            grid=(1,),                                     # single fused invocation
            in_specs=[
                pl.BlockSpec((H, N, D_in + 1), lambda i: (0, 0, 0)),         # x_aug
                pl.BlockSpec((H, D_in + 1, D_out + 1), lambda i: (0, 0, 0)), # wf_pack
                pl.BlockSpec((H, E * N, D_out + 1), lambda i: (0, 0, 0)),    # wa_pack
                pl.BlockSpec((E * N, N), lambda i: (0, 0)),                  # mask
                pl.BlockSpec((H, 1, E), lambda i: (0, 0, 0)),                # att_w
            ],
            out_specs=pl.BlockSpec((H, N, D_out), lambda i: (0, 0, 0)),
        ),
        compiler_params=pltpu.CompilerParams(
            dimension_semantics=("arbitrary",)),
    )(x_aug, wf_pack, wa_pack, mask2d, att_w)
    return out, adj   # GCNLayer.forward returns (out, adj)


# --------------------------- pure-JAX reference ------------------------------
def gcn_layer_ref(x, wf_t, bf, wa, ba, mask, att_w):
    H, N, _ = x.shape
    E = mask.shape[0]
    outs = []
    for h in range(H):
        z = x[h] @ wf_t[h] + bf[h]
        aw = jax.nn.softmax(att_w[h, 0])
        alpha = jnp.zeros((N, N), jnp.float32)
        for e in range(E):
            s = wa[h, e] @ z.T + ba[h, e]
            s = jnp.where(s > 0, s, 0.2 * s)
            m = mask[e]
            s_m = jnp.where(m > 0, s, -1e30)
            p = jnp.exp(s_m - jnp.max(s_m, -1, keepdims=True)) * m
            att = p / jnp.sum(p, -1, keepdims=True)
            alpha = alpha + att * aw[e]
        alpha = jnp.where(alpha > 0, alpha, -9e15)
        alpha = jax.nn.softmax(alpha, -1)
        outs.append(jnp.maximum(alpha @ z, 0.0))
    return jnp.stack(outs, axis=0)


# --------------------------------- main --------------------------------------
if __name__ == "__main__":
    H, N, D_in, D_out, E = 2, 16, 8, 32, 3   # num_head, nodes, in_dim, out_dim, num_edge

    key = jax.random.PRNGKey(0)
    ks = jax.random.split(key, 6)

    # node features per head + (unused, passed-through) adjacency
    x = jax.random.normal(ks[0], (H, N, D_in), jnp.float32)
    adj = jnp.ones((N, N), jnp.float32)

    # filter Linear(in_dim, out_dim) per head (xavier-uniform style init)
    lim_f = float(np.sqrt(6.0 / (D_in + D_out)))
    wf = jax.random.uniform(ks[1], (H, D_out, D_in), jnp.float32, -lim_f, lim_f)
    wf_t = jnp.transpose(wf, (0, 2, 1))                       # (H, D_in, D_out)
    bf = jax.random.uniform(ks[2], (H, 1, D_out), jnp.float32, -0.1, 0.1)

    # attention Linear(out_dim, N) per head / edge
    lim_a = float(np.sqrt(6.0 / (D_out + N)))
    wa = jax.random.uniform(ks[3], (H, E, N, D_out), jnp.float32, -lim_a, lim_a)
    ba = jax.random.uniform(ks[4], (H, E, N, 1), jnp.float32, -0.1, 0.1)

    # att_weights: nn.init.constant_(weight, 0.1), shape (1, 1, num_edge) per head
    att_w = jnp.full((H, 1, E), 0.1, jnp.float32)

    # deterministic neighbor index lists -> dense masks (E, N, N); each node is
    # always its own neighbor so every softmax is well defined.
    mask_np = np.zeros((E, N, N), np.float32)
    for e in range(E):
        for k in range(N):
            nbrs = {k, (k + e + 1) % N, (k + 3 * (e + 1)) % N, (k + 5 + e) % N}
            for j in nbrs:
                mask_np[e, k, j] = 1.0
    mask = jnp.asarray(mask_np)

    out, adj_out = gcn_layer(x, adj, wf_t, bf, wa, ba, mask, att_w)
    out = jax.block_until_ready(out)

    ref = gcn_layer_ref(x, wf_t, bf, wa, ba, mask, att_w)
    np.testing.assert_allclose(np.asarray(out), np.asarray(ref),
                               rtol=1e-4, atol=1e-5)
    assert out.shape == (H, N, D_out)
    print("KERNEL_OK")
</pallas_src>

<mosaic_0001>
module attributes {stable_mosaic.version = 11 : i64} {
  func.func @gcn_layer_kernel(%arg0: i32, %arg1: memref<2x16x9xf32, #tpu.memory_space<vmem>>, %arg2: memref<2x9x33xf32, #tpu.memory_space<vmem>>, %arg3: memref<2x48x33xf32, #tpu.memory_space<vmem>>, %arg4: memref<48x16xf32, #tpu.memory_space<vmem>>, %arg5: memref<2x1x3xf32, #tpu.memory_space<vmem>>, %arg6: memref<2x16x32xf32, #tpu.memory_space<vmem>>) attributes {dimension_semantics = [#tpu.dimension_semantics<arbitrary>], iteration_bounds = array<i64: 1>, scalar_prefetch = 0 : i64, scratch_operands = 0 : i64, tpu.core_type = #tpu.core_type<tc>, window_params = [{pipeline_mode = #tpu.pipeline_mode<synchronous>, transform_indices = @transform_0, window_bounds = array<i64: 2, 16, 9>}, {pipeline_mode = #tpu.pipeline_mode<synchronous>, transform_indices = @transform_1, window_bounds = array<i64: 2, 9, 33>}, {pipeline_mode = #tpu.pipeline_mode<synchronous>, transform_indices = @transform_2, window_bounds = array<i64: 2, 48, 33>}, {pipeline_mode = #tpu.pipeline_mode<synchronous>, transform_indices = @transform_3, window_bounds = array<i64: 48, 16>}, {pipeline_mode = #tpu.pipeline_mode<synchronous>, transform_indices = @transform_4, window_bounds = array<i64: 2, 1, 3>}, {pipeline_mode = #tpu.pipeline_mode<synchronous>, transform_indices = @transform_5, window_bounds = array<i64: 2, 16, 32>}]} {
    %c0 = arith.constant 0 : index
    %c0_0 = arith.constant 0 : index
    %0 = vector.load %arg4[%c0, %c0_0] : memref<48x16xf32, #tpu.memory_space<vmem>>, vector<48x16xf32>
    %c0_1 = arith.constant 0 : index
    %c0_2 = arith.constant 0 : index
    %c0_3 = arith.constant 0 : index
    %1 = vector.load %arg1[%c0_1, %c0_2, %c0_3] : memref<2x16x9xf32, #tpu.memory_space<vmem>>, vector<1x16x9xf32>
    %2 = vector.shape_cast %1 : vector<1x16x9xf32> to vector<16x9xf32>
    %c0_4 = arith.constant 0 : index
    %c0_5 = arith.constant 0 : index
    %c0_6 = arith.constant 0 : index
    %3 = vector.load %arg2[%c0_4, %c0_5, %c0_6] : memref<2x9x33xf32, #tpu.memory_space<vmem>>, vector<1x9x33xf32>
    %4 = vector.shape_cast %3 : vector<1x9x33xf32> to vector<9x33xf32>
    %cst = arith.constant dense<0.000000e+00> : vector<16x33xf32>
    %5 = tpu.matmul %2, %4, %cst {dimension_numbers = #tpu.dot_dimension_numbers<[1], [0], [0], [1], [0, 0, 1, 1], [], []>} : vector<16x9xf32>, vector<9x33xf32>, vector<16x33xf32> -> vector<16x33xf32>
    %c0_7 = arith.constant 0 : index
    %c0_8 = arith.constant 0 : index
    %c0_9 = arith.constant 0 : index
    %6 = vector.load %arg3[%c0_7, %c0_8, %c0_9] : memref<2x48x33xf32, #tpu.memory_space<vmem>>, vector<1x48x33xf32>
    %7 = vector.shape_cast %6 : vector<1x48x33xf32> to vector<48x33xf32>
    %cst_10 = arith.constant dense<0.000000e+00> : vector<48x16xf32>
    %8 = tpu.matmul %7, %5, %cst_10 {dimension_numbers = #tpu.dot_dimension_numbers<[1], [1], [0], [0], [0, 0, 1, 0], [], []>} : vector<48x33xf32>, vector<16x33xf32>, vector<48x16xf32> -> vector<48x16xf32>
    %cst_11 = arith.constant 0.000000e+00 : f32
    %9 = vector.broadcast %cst_11 : f32 to vector<48x16xf32>
    %10 = arith.cmpf ogt, %8, %9 : vector<48x16xf32>
    %cst_12 = arith.constant 2.000000e-01 : f32
    %11 = vector.broadcast %cst_12 : f32 to vector<48x16xf32>
    %12 = arith.mulf %11, %8 : vector<48x16xf32>
    %13 = arith.select %10, %8, %12 : vector<48x16xi1>, vector<48x16xf32>
    %cst_13 = arith.constant 0.000000e+00 : f32
    %14 = vector.broadcast %cst_13 : f32 to vector<48x16xf32>
    %15 = arith.cmpf ogt, %0, %14 : vector<48x16xf32>
    %cst_14 = arith.constant -1.000000e+30 : f32
    %16 = vector.broadcast %cst_14 : f32 to vector<48x16xf32>
    %17 = arith.select %15, %13, %16 : vector<48x16xi1>, vector<48x16xf32>
    %cst_15 = arith.constant dense<0xFF800000> : vector<48xf32>
    %18 = vector.multi_reduction <maximumf>, %17, %cst_15 [1] : vector<48x16xf32> to vector<48xf32>
    %19 = vector.shape_cast %18 : vector<48xf32> to vector<48x1xf32>
    %20 = vector.broadcast %19 : vector<48x1xf32> to vector<48x16xf32>
    %21 = arith.subf %17, %20 : vector<48x16xf32>
    %22 = math.exp %21 : vector<48x16xf32>
    %23 = arith.mulf %22, %0 : vector<48x16xf32>
    %cst_16 = arith.constant dense<0.000000e+00> : vector<48xf32>
    %24 = vector.multi_reduction <add>, %23, %cst_16 [1] : vector<48x16xf32> to vector<48xf32>
    %25 = vector.shape_cast %24 : vector<48xf32> to vector<48x1xf32>
    %26 = tpu.reciprocal %25 {approx = true} : vector<48x1xf32> -> vector<48x1xf32>
    %27 = arith.mulf %25, %26 : vector<48x1xf32>
    %cst_17 = arith.constant 2.000000e+00 : f32
    %28 = vector.broadcast %cst_17 : f32 to vector<48x1xf32>
    %29 = arith.subf %28, %27 : vector<48x1xf32>
    %30 = arith.mulf %26, %29 : vector<48x1xf32>
    %31 = vector.broadcast %30 : vector<48x1xf32> to vector<48x16xf32>
    %32 = arith.mulf %23, %31 : vector<48x16xf32>
    %c0_18 = arith.constant 0 : index
    %c0_19 = arith.constant 0 : index
    %c0_20 = arith.constant 0 : index
    %33 = vector.load %arg5[%c0_18, %c0_19, %c0_20] : memref<2x1x3xf32, #tpu.memory_space<vmem>>, vector<1x1x3xf32>
    %34 = vector.shape_cast %33 : vector<1x1x3xf32> to vector<1x3xf32>
    %cst_21 = arith.constant dense<0xFF800000> : vector<1xf32>
    %35 = vector.multi_reduction <maximumf>, %34, %cst_21 [1] : vector<1x3xf32> to vector<1xf32>
    %36 = vector.shape_cast %35 : vector<1xf32> to vector<1x1xf32>
    %37 = vector.broadcast %36 : vector<1x1xf32> to vector<1x3xf32>
    %38 = arith.subf %34, %37 : vector<1x3xf32>
    %39 = math.exp %38 : vector<1x3xf32>
    %cst_22 = arith.constant dense<0.000000e+00> : vector<1xf32>
    %40 = vector.multi_reduction <add>, %39, %cst_22 [1] : vector<1x3xf32> to vector<1xf32>
    %41 = vector.shape_cast %40 : vector<1xf32> to vector<1x1xf32>
    %42 = tpu.reciprocal %41 {approx = true} : vector<1x1xf32> -> vector<1x1xf32>
    %43 = arith.mulf %41, %42 : vector<1x1xf32>
    %cst_23 = arith.constant 2.000000e+00 : f32
    %44 = vector.broadcast %cst_23 : f32 to vector<1x1xf32>
    %45 = arith.subf %44, %43 : vector<1x1xf32>
    %46 = arith.mulf %42, %45 : vector<1x1xf32>
    %47 = vector.broadcast %46 : vector<1x1xf32> to vector<1x3xf32>
    %48 = arith.mulf %39, %47 : vector<1x3xf32>
    %49 = vector.extract_strided_slice %32 {offsets = [0, 0], sizes = [16, 16], strides = [1, 1]} : vector<48x16xf32> to vector<16x16xf32>
    %50 = vector.extract_strided_slice %48 {offsets = [0, 0], sizes = [1, 1], strides = [1, 1]} : vector<1x3xf32> to vector<1x1xf32>
    %51 = vector.broadcast %50 : vector<1x1xf32> to vector<16x16xf32>
    %52 = arith.mulf %49, %51 : vector<16x16xf32>
    %53 = vector.extract_strided_slice %32 {offsets = [16, 0], sizes = [16, 16], strides = [1, 1]} : vector<48x16xf32> to vector<16x16xf32>
    %54 = vector.extract_strided_slice %48 {offsets = [0, 1], sizes = [1, 1], strides = [1, 1]} : vector<1x3xf32> to vector<1x1xf32>
    %55 = vector.broadcast %54 : vector<1x1xf32> to vector<16x16xf32>
    %56 = arith.mulf %53, %55 : vector<16x16xf32>
    %57 = arith.addf %52, %56 : vector<16x16xf32>
    %58 = vector.extract_strided_slice %32 {offsets = [32, 0], sizes = [16, 16], strides = [1, 1]} : vector<48x16xf32> to vector<16x16xf32>
    %59 = vector.extract_strided_slice %48 {offsets = [0, 2], sizes = [1, 1], strides = [1, 1]} : vector<1x3xf32> to vector<1x1xf32>
    %60 = vector.broadcast %59 : vector<1x1xf32> to vector<16x16xf32>
    %61 = arith.mulf %58, %60 : vector<16x16xf32>
    %62 = arith.addf %57, %61 : vector<16x16xf32>
    %cst_24 = arith.constant 0.000000e+00 : f32
    %63 = vector.broadcast %cst_24 : f32 to vector<16x16xf32>
    %64 = arith.cmpf ogt, %62, %63 : vector<16x16xf32>
    %cst_25 = arith.constant -9.000000e+15 : f32
    %65 = vector.broadcast %cst_25 : f32 to vector<16x16xf32>
    %66 = arith.select %64, %62, %65 : vector<16x16xi1>, vector<16x16xf32>
    %cst_26 = arith.constant dense<0xFF800000> : vector<16xf32>
    %67 = vector.multi_reduction <maximumf>, %66, %cst_26 [1] : vector<16x16xf32> to vector<16xf32>
    %68 = vector.shape_cast %67 : vector<16xf32> to vector<16x1xf32>
    %69 = vector.broadcast %68 : vector<16x1xf32> to vector<16x16xf32>
    %70 = arith.subf %66, %69 : vector<16x16xf32>
    %71 = math.exp %70 : vector<16x16xf32>
    %cst_27 = arith.constant dense<0.000000e+00> : vector<16xf32>
    %72 = vector.multi_reduction <add>, %71, %cst_27 [1] : vector<16x16xf32> to vector<16xf32>
    %73 = vector.shape_cast %72 : vector<16xf32> to vector<16x1xf32>
    %74 = tpu.reciprocal %73 {approx = true} : vector<16x1xf32> -> vector<16x1xf32>
    %75 = arith.mulf %73, %74 : vector<16x1xf32>
    %cst_28 = arith.constant 2.000000e+00 : f32
    %76 = vector.broadcast %cst_28 : f32 to vector<16x1xf32>
    %77 = arith.subf %76, %75 : vector<16x1xf32>
    %78 = arith.mulf %74, %77 : vector<16x1xf32>
    %79 = vector.broadcast %78 : vector<16x1xf32> to vector<16x16xf32>
    %80 = arith.mulf %71, %79 : vector<16x16xf32>
    %81 = vector.extract_strided_slice %5 {offsets = [0, 0], sizes = [16, 32], strides = [1, 1]} : vector<16x33xf32> to vector<16x32xf32>
    %cst_29 = arith.constant dense<0.000000e+00> : vector<16x32xf32>
    %82 = tpu.matmul %80, %81, %cst_29 {dimension_numbers = #tpu.dot_dimension_numbers<[1], [0], [0], [1], [0, 0, 1, 1], [], []>} : vector<16x16xf32>, vector<16x32xf32>, vector<16x32xf32> -> vector<16x32xf32>
    %cst_30 = arith.constant 0.000000e+00 : f32
    %83 = vector.broadcast %cst_30 : f32 to vector<16x32xf32>
    %84 = arith.maximumf %82, %83 : vector<16x32xf32>
    %c0_31 = arith.constant 0 : index
    %c0_32 = arith.constant 0 : index
    %c0_33 = arith.constant 0 : index
    %85 = vector.load %arg6[%c0_31, %c0_32, %c0_33] : memref<2x16x32xf32, #tpu.memory_space<vmem>>, vector<1x16x32xf32>
    %86 = vector.shape_cast %85 : vector<1x16x32xf32> to vector<16x32xf32>
    %87 = vector.shape_cast %84 : vector<16x32xf32> to vector<1x16x32xf32>
    tpu.vector_store %arg6[%c0_31, %c0_32, %c0_33], %87 {strides = array<i32>} : memref<2x16x32xf32, #tpu.memory_space<vmem>>, vector<1x16x32xf32>,
    %c1 = arith.constant 1 : index
    %c0_34 = arith.constant 0 : index
    %c0_35 = arith.constant 0 : index
    %88 = vector.load %arg1[%c1, %c0_34, %c0_35] : memref<2x16x9xf32, #tpu.memory_space<vmem>>, vector<1x16x9xf32>
    %89 = vector.shape_cast %88 : vector<1x16x9xf32> to vector<16x9xf32>
    %c1_36 = arith.constant 1 : index
    %c0_37 = arith.constant 0 : index
    %c0_38 = arith.constant 0 : index
    %90 = vector.load %arg2[%c1_36, %c0_37, %c0_38] : memref<2x9x33xf32, #tpu.memory_space<vmem>>, vector<1x9x33xf32>
    %91 = vector.shape_cast %90 : vector<1x9x33xf32> to vector<9x33xf32>
    %cst_39 = arith.constant dense<0.000000e+00> : vector<16x33xf32>
    %92 = tpu.matmul %89, %91, %cst_39 {dimension_numbers = #tpu.dot_dimension_numbers<[1], [0], [0], [1], [0, 0, 1, 1], [], []>} : vector<16x9xf32>, vector<9x33xf32>, vector<16x33xf32> -> vector<16x33xf32>
    %c1_40 = arith.constant 1 : index
    %c0_41 = arith.constant 0 : index
    %c0_42 = arith.constant 0 : index
    %93 = vector.load %arg3[%c1_40, %c0_41, %c0_42] : memref<2x48x33xf32, #tpu.memory_space<vmem>>, vector<1x48x33xf32>
    %94 = vector.shape_cast %93 : vector<1x48x33xf32> to vector<48x33xf32>
    %cst_43 = arith.constant dense<0.000000e+00> : vector<48x16xf32>
    %95 = tpu.matmul %94, %92, %cst_43 {dimension_numbers = #tpu.dot_dimension_numbers<[1], [1], [0], [0], [0, 0, 1, 0], [], []>} : vector<48x33xf32>, vector<16x33xf32>, vector<48x16xf32> -> vector<48x16xf32>
    %cst_44 = arith.constant 0.000000e+00 : f32
    %96 = vector.broadcast %cst_44 : f32 to vector<48x16xf32>
    %97 = arith.cmpf ogt, %95, %96 : vector<48x16xf32>
    %cst_45 = arith.constant 2.000000e-01 : f32
    %98 = vector.broadcast %cst_45 : f32 to vector<48x16xf32>
    %99 = arith.mulf %98, %95 : vector<48x16xf32>
    %100 = arith.select %97, %95, %99 : vector<48x16xi1>, vector<48x16xf32>
    %cst_46 = arith.constant 0.000000e+00 : f32
    %101 = vector.broadcast %cst_46 : f32 to vector<48x16xf32>
    %102 = arith.cmpf ogt, %0, %101 : vector<48x16xf32>
    %cst_47 = arith.constant -1.000000e+30 : f32
    %103 = vector.broadcast %cst_47 : f32 to vector<48x16xf32>
    %104 = arith.select %102, %100, %103 : vector<48x16xi1>, vector<48x16xf32>
    %cst_48 = arith.constant dense<0xFF800000> : vector<48xf32>
    %105 = vector.multi_reduction <maximumf>, %104, %cst_48 [1] : vector<48x16xf32> to vector<48xf32>
    %106 = vector.shape_cast %105 : vector<48xf32> to vector<48x1xf32>
    %107 = vector.broadcast %106 : vector<48x1xf32> to vector<48x16xf32>
    %108 = arith.subf %104, %107 : vector<48x16xf32>
    %109 = math.exp %108 : vector<48x16xf32>
    %110 = arith.mulf %109, %0 : vector<48x16xf32>
    %cst_49 = arith.constant dense<0.000000e+00> : vector<48xf32>
    %111 = vector.multi_reduction <add>, %110, %cst_49 [1] : vector<48x16xf32> to vector<48xf32>
    %112 = vector.shape_cast %111 : vector<48xf32> to vector<48x1xf32>
    %113 = tpu.reciprocal %112 {approx = true} : vector<48x1xf32> -> vector<48x1xf32>
    %114 = arith.mulf %112, %113 : vector<48x1xf32>
    %cst_50 = arith.constant 2.000000e+00 : f32
    %115 = vector.broadcast %cst_50 : f32 to vector<48x1xf32>
    %116 = arith.subf %115, %114 : vector<48x1xf32>
    %117 = arith.mulf %113, %116 : vector<48x1xf32>
    %118 = vector.broadcast %117 : vector<48x1xf32> to vector<48x16xf32>
    %119 = arith.mulf %110, %118 : vector<48x16xf32>
    %c1_51 = arith.constant 1 : index
    %c0_52 = arith.constant 0 : index
    %c0_53 = arith.constant 0 : index
    %120 = vector.load %arg5[%c1_51, %c0_52, %c0_53] : memref<2x1x3xf32, #tpu.memory_space<vmem>>, vector<1x1x3xf32>
    %121 = vector.shape_cast %120 : vector<1x1x3xf32> to vector<1x3xf32>
    %cst_54 = arith.constant dense<0xFF800000> : vector<1xf32>
    %122 = vector.multi_reduction <maximumf>, %121, %cst_54 [1] : vector<1x3xf32> to vector<1xf32>
    %123 = vector.shape_cast %122 : vector<1xf32> to vector<1x1xf32>
    %124 = vector.broadcast %123 : vector<1x1xf32> to vector<1x3xf32>
    %125 = arith.subf %121, %124 : vector<1x3xf32>
    %126 = math.exp %125 : vector<1x3xf32>
    %cst_55 = arith.constant dense<0.000000e+00> : vector<1xf32>
    %127 = vector.multi_reduction <add>, %126, %cst_55 [1] : vector<1x3xf32> to vector<1xf32>
    %128 = vector.shape_cast %127 : vector<1xf32> to vector<1x1xf32>
    %129 = tpu.reciprocal %128 {approx = true} : vector<1x1xf32> -> vector<1x1xf32>
    %130 = arith.mulf %128, %129 : vector<1x1xf32>
    %cst_56 = arith.constant 2.000000e+00 : f32
    %131 = vector.broadcast %cst_56 : f32 to vector<1x1xf32>
    %132 = arith.subf %131, %130 : vector<1x1xf32>
    %133 = arith.mulf %129, %132 : vector<1x1xf32>
    %134 = vector.broadcast %133 : vector<1x1xf32> to vector<1x3xf32>
    %135 = arith.mulf %126, %134 : vector<1x3xf32>
    %136 = vector.extract_strided_slice %119 {offsets = [0, 0], sizes = [16, 16], strides = [1, 1]} : vector<48x16xf32> to vector<16x16xf32>
    %137 = vector.extract_strided_slice %135 {offsets = [0, 0], sizes = [1, 1], strides = [1, 1]} : vector<1x3xf32> to vector<1x1xf32>
    %138 = vector.broadcast %137 : vector<1x1xf32> to vector<16x16xf32>
    %139 = arith.mulf %136, %138 : vector<16x16xf32>
    %140 = vector.extract_strided_slice %119 {offsets = [16, 0], sizes = [16, 16], strides = [1, 1]} : vector<48x16xf32> to vector<16x16xf32>
    %141 = vector.extract_strided_slice %135 {offsets = [0, 1], sizes = [1, 1], strides = [1, 1]} : vector<1x3xf32> to vector<1x1xf32>
    %142 = vector.broadcast %141 : vector<1x1xf32> to vector<16x16xf32>
    %143 = arith.mulf %140, %142 : vector<16x16xf32>
    %144 = arith.addf %139, %143 : vector<16x16xf32>
    %145 = vector.extract_strided_slice %119 {offsets = [32, 0], sizes = [16, 16], strides = [1, 1]} : vector<48x16xf32> to vector<16x16xf32>
    %146 = vector.extract_strided_slice %135 {offsets = [0, 2], sizes = [1, 1], strides = [1, 1]} : vector<1x3xf32> to vector<1x1xf32>
    %147 = vector.broadcast %146 : vector<1x1xf32> to vector<16x16xf32>
    %148 = arith.mulf %145, %147 : vector<16x16xf32>
    %149 = arith.addf %144, %148 : vector<16x16xf32>
    %cst_57 = arith.constant 0.000000e+00 : f32
    %150 = vector.broadcast %cst_57 : f32 to vector<16x16xf32>
    %151 = arith.cmpf ogt, %149, %150 : vector<16x16xf32>
    %cst_58 = arith.constant -9.000000e+15 : f32
    %152 = vector.broadcast %cst_58 : f32 to vector<16x16xf32>
    %153 = arith.select %151, %149, %152 : vector<16x16xi1>, vector<16x16xf32>
    %cst_59 = arith.constant dense<0xFF800000> : vector<16xf32>
    %154 = vector.multi_reduction <maximumf>, %153, %cst_59 [1] : vector<16x16xf32> to vector<16xf32>
    %155 = vector.shape_cast %154 : vector<16xf32> to vector<16x1xf32>
    %156 = vector.broadcast %155 : vector<16x1xf32> to vector<16x16xf32>
    %157 = arith.subf %153, %156 : vector<16x16xf32>
    %158 = math.exp %157 : vector<16x16xf32>
    %cst_60 = arith.constant dense<0.000000e+00> : vector<16xf32>
    %159 = vector.multi_reduction <add>, %158, %cst_60 [1] : vector<16x16xf32> to vector<16xf32>
    %160 = vector.shape_cast %159 : vector<16xf32> to vector<16x1xf32>
    %161 = tpu.reciprocal %160 {approx = true} : vector<16x1xf32> -> vector<16x1xf32>
    %162 = arith.mulf %160, %161 : vector<16x1xf32>
    %cst_61 = arith.constant 2.000000e+00 : f32
    %163 = vector.broadcast %cst_61 : f32 to vector<16x1xf32>
    %164 = arith.subf %163, %162 : vector<16x1xf32>
    %165 = arith.mulf %161, %164 : vector<16x1xf32>
    %166 = vector.broadcast %165 : vector<16x1xf32> to vector<16x16xf32>
    %167 = arith.mulf %158, %166 : vector<16x16xf32>
    %168 = vector.extract_strided_slice %92 {offsets = [0, 0], sizes = [16, 32], strides = [1, 1]} : vector<16x33xf32> to vector<16x32xf32>
    %cst_62 = arith.constant dense<0.000000e+00> : vector<16x32xf32>
    %169 = tpu.matmul %167, %168, %cst_62 {dimension_numbers = #tpu.dot_dimension_numbers<[1], [0], [0], [1], [0, 0, 1, 1], [], []>} : vector<16x16xf32>, vector<16x32xf32>, vector<16x32xf32> -> vector<16x32xf32>
    %cst_63 = arith.constant 0.000000e+00 : f32
    %170 = vector.broadcast %cst_63 : f32 to vector<16x32xf32>
    %171 = arith.maximumf %169, %170 : vector<16x32xf32>
    %c1_64 = arith.constant 1 : index
    %c0_65 = arith.constant 0 : index
    %c0_66 = arith.constant 0 : index
    %172 = vector.load %arg6[%c1_64, %c0_65, %c0_66] : memref<2x16x32xf32, #tpu.memory_space<vmem>>, vector<1x16x32xf32>
    %173 = vector.shape_cast %172 : vector<1x16x32xf32> to vector<16x32xf32>
    %174 = vector.shape_cast %171 : vector<16x32xf32> to vector<1x16x32xf32>
    tpu.vector_store %arg6[%c1_64, %c0_65, %c0_66], %174 {strides = array<i32>} : memref<2x16x32xf32, #tpu.memory_space<vmem>>, vector<1x16x32xf32>,
    return
  }
  func.func @transform_0(%arg0: i32) -> (i32, i32, i32) {
    %c0_i32 = arith.constant 0 : i32
    %c0_i32_0 = arith.constant 0 : i32
    %c0_i32_1 = arith.constant 0 : i32
    %c0_i32_2 = arith.constant 0 : i32
    return %c0_i32, %c0_i32_0, %c0_i32_1 : i32, i32, i32
  }
  func.func @transform_1(%arg0: i32) -> (i32, i32, i32) {
    %c0_i32 = arith.constant 0 : i32
    %c0_i32_0 = arith.constant 0 : i32
    %c0_i32_1 = arith.constant 0 : i32
    %c0_i32_2 = arith.constant 0 : i32
    return %c0_i32, %c0_i32_0, %c0_i32_1 : i32, i32, i32
  }
  func.func @transform_2(%arg0: i32) -> (i32, i32, i32) {
    %c0_i32 = arith.constant 0 : i32
    %c0_i32_0 = arith.constant 0 : i32
    %c0_i32_1 = arith.constant 0 : i32
    %c0_i32_2 = arith.constant 0 : i32
    return %c0_i32, %c0_i32_0, %c0_i32_1 : i32, i32, i32
  }
  func.func @transform_3(%arg0: i32) -> (i32, i32) {
    %c0_i32 = arith.constant 0 : i32
    %c0_i32_0 = arith.constant 0 : i32
    %c0_i32_1 = arith.constant 0 : i32
    return %c0_i32, %c0_i32_0 : i32, i32
  }
  func.func @transform_4(%arg0: i32) -> (i32, i32, i32) {
    %c0_i32 = arith.constant 0 : i32
    %c0_i32_0 = arith.constant 0 : i32
    %c0_i32_1 = arith.constant 0 : i32
    %c0_i32_2 = arith.constant 0 : i32
    return %c0_i32, %c0_i32_0, %c0_i32_1 : i32, i32, i32
  }
  func.func @transform_5(%arg0: i32) -> (i32, i32, i32) {
    %c0_i32 = arith.constant 0 : i32
    %c0_i32_0 = arith.constant 0 : i32
    %c0_i32_1 = arith.constant 0 : i32
    %c0_i32_2 = arith.constant 0 : i32
    return %c0_i32, %c0_i32_0, %c0_i32_1 : i32, i32, i32
  }
}

</mosaic_0001>

<llo_original>
// kernel: tpu_custom_call.1
$region0: #{tpu_custom_call.1}
  #allocation0 [shape = 'u32[]', space=smem, size = 0x4, offset = 0x4, fixed_abs, tag = 'smem constant byte address 0x4 - core index']
  #allocation1 [shape = 'u32[72,128]{1,0:T(1,128)}', space=vmem, size = 0x9000, scoped, tag = 'internal scratch']
  %s0 = inlined_call_operand.vmem [shape: f32[2,16,9], index: 0, kind: input, shape index: {}]
  %s1 = inlined_call_operand.vmem [shape: f32[2,9,33], index: 1, kind: input, shape index: {}]
  %s2 = inlined_call_operand.vmem [shape: f32[2,48,33], index: 2, kind: input, shape index: {}]
  %s3 = inlined_call_operand.vmem [shape: f32[48,16], index: 3, kind: input, shape index: {}]
  %s4 = inlined_call_operand.vmem [shape: f32[2,1,3], index: 4, kind: input, shape index: {}]
  %s5 = inlined_call_operand.hbm [shape: f32[2,16,32], index: 5, kind: output, shape index: {}]
  %s6 = sld [smem:[#allocation0]]
  $region30: #{tpu_custom_call.1} parent=0
    _
  %s8 = ssub.s32 1, %s6
  %s9 = scalar_select 0, %s8, %s6
  $region1: #{tpu_custom_call.1} parent=0
    #allocation2 [shape = 'u8[16384]{0}', space=vmem, size = 0x4000, scoped, tag = 'output window, operand 0, single buffered']
    #allocation3 [shape = 's32[1]{0}', space=sflag, size = 0x4, scoped, tag = 'scoped memory for tpu_custom_call.1']
    %10 = vsyncpa [#allocation3], 0
    // Predicated region
    $region2: #{tpu_custom_call.1} parent=1 // pred_check
      _
    $region3: #{tpu_custom_call.1} parent=1 // pred_check_branch
      %12 = sbr.rel (0) target = $region5
    $region4: #{tpu_custom_call.1} parent=1 // pred_region
      _
    $region5: #{tpu_custom_call.1} parent=1 // pred_fallthru
      _
    // Predicated region
    $region6: #{tpu_custom_call.1} parent=1 // pred_check
      _
    $region7: #{tpu_custom_call.1} parent=1 // pred_check_branch
      %14 = sbr.rel (0) target = $region9
    $region8: #{tpu_custom_call.1} parent=1 // pred_region
      _
    $region9: #{tpu_custom_call.1} parent=1 // pred_fallthru
      _
    // Predicated region
    $region10: #{tpu_custom_call.1} parent=1 // pred_check
      _
    $region11: #{tpu_custom_call.1} parent=1 // pred_check_branch
      %16 = sbr.rel (0) target = $region13
    $region12: #{tpu_custom_call.1} parent=1 // pred_region
      _
    $region13: #{tpu_custom_call.1} parent=1 // pred_fallthru
      _
    // Predicated region
    $region14: #{tpu_custom_call.1} parent=1 // pred_check
      _
    $region15: #{tpu_custom_call.1} parent=1 // pred_check_branch
      %18 = sbr.rel (0) target = $region17
    $region16: #{tpu_custom_call.1} parent=1 // pred_region
      _
    $region17: #{tpu_custom_call.1} parent=1 // pred_fallthru
      _
    // Predicated region
    $region18: #{tpu_custom_call.1} parent=1 // pred_check
      _
    $region19: #{tpu_custom_call.1} parent=1 // pred_check_branch
      %20 = sbr.rel (0) target = $region21
    $region20: #{tpu_custom_call.1} parent=1 // pred_region
      _
    $region21: #{tpu_custom_call.1} parent=1 // pred_fallthru
      _
    %v21 = vld [vmem:[%s3] sm:$0xff]
    %v22 = vld [vmem:[%s3 + $0x8] sm:$0xff]
    %v23 = vld [vmem:[%s3 + $0x10] sm:$0xff]
    %v24 = vld [vmem:[%s3 + $0x18] sm:$0xff]
    %v25 = vld [vmem:[%s3 + $0x20] sm:$0xff]
    %v26 = vld [vmem:[%s3 + $0x28] sm:$0xff]
    %v27 = vld [vmem:[%s0] sm:$0xff]
    %v28 = vld [vmem:[%s0 + $0x8] sm:$0xff]
    %v29 = vld [vmem:[%s1] sm:$0xff]
    %v30 = vld [vmem:[%s1 + $0x8] sm:$0x1]
    %vm31 = vcmask 72704
    %v33 = vsel %vm31, %v27, 0
    %v36 = vsel %vm31, %v28, 0
    %vm38 = vcmask 1040384
    %v40 = vsel %vm38, %v30, 0
    %42 = vmatpush.msra.mxu0 0.0
    %43 = vmatpush.msra.mxu0 0.0
    %44 = vmatpush.msra.mxu0 0.0
    %45 = vmatpush.msra.mxu0 0.0
    %46 = vmatpush.msra.mxu0 0.0
    %47 = vmatpush.msra.mxu0 0.0
    %48 = vmatpush.msra.mxu0 0.0
    %49 = vmatpush.msra.mxu0 0.0
    %50 = vmatpush.msra.mxu0 0.0
    %51 = vmatpush.msra.mxu0 0.0
    %52 = vmatpush.msra.mxu0 0.0
    %53 = vmatpush.msra.mxu0 0.0
    %54 = vmatpush.msra.mxu0 0.0
    %55 = vmatpush.msra.mxu0 0.0
    %56 = vmatpush.msra.mxu0 %v40
    %57 = vmatpush.msra.mxu0 %v29
    %58 = vmatmul.f32.gmra.mxu0 %v33
    %v59 = vpop.f32.mrf.mxu0
    %v60 = vadd.f32 0.0, %v59
    %61 = vmatmul.f32.gmra.mxu0 %v36
    %v62 = vpop.f32.mrf.mxu0
    %v63 = vadd.f32 0.0, %v62
    %64 = vdwg.mxu0
    %v65 = vld [vmem:[%s2] sm:$0xff]
    %v66 = vld [vmem:[%s2 + $0x8] sm:$0xff]
    %v67 = vld [vmem:[%s2 + $0x10] sm:$0xff]
    %v68 = vld [vmem:[%s2 + $0x18] sm:$0xff]
    %v69 = vld [vmem:[%s2 + $0x20] sm:$0xff]
    %v70 = vld [vmem:[%s2 + $0x28] sm:$0xff]
    %vm71 = vcmask 269312
    %v73 = vsel %vm71, %v65, 0
    %v76 = vsel %vm71, %v66, 0
    %v79 = vsel %vm71, %v67, 0
    %v82 = vsel %vm71, %v68, 0
    %v85 = vsel %vm71, %v69, 0
    %v88 = vsel %vm71, %v70, 0
    %v91 = vsel %vm71, %v60, 0
    %v94 = vsel %vm71, %v63, 0
    %96 = vmatpush.xpose.msra.mxu0 0.0
    %97 = vmatpush.xpose.msra.mxu0 0.0
    %98 = vmatpush.xpose.msra.mxu0 0.0
    %99 = vmatpush.xpose.msra.mxu0 0.0
    %100 = vmatpush.xpose.msra.mxu0 0.0
    %101 = vmatpush.xpose.msra.mxu0 0.0
    %102 = vmatpush.xpose.msra.mxu0 0.0
    %103 = vmatpush.xpose.msra.mxu0 0.0
    %104 = vmatpush.xpose.msra.mxu0 0.0
    %105 = vmatpush.xpose.msra.mxu0 0.0
    %106 = vmatpush.xpose.msra.mxu0 0.0
    %107 = vmatpush.xpose.msra.mxu0 0.0
    %108 = vmatpush.xpose.msra.mxu0 0.0
    %109 = vmatpush.xpose.msra.mxu0 0.0
    %110 = vmatpush.xpose.msra.mxu0 %v94
    %111 = vmatpush.xpose.msra.mxu0 %v91
    %112 = vmatmul.f32.gmra.mxu0 %v73
    %v113 = vpop.f32.mrf.mxu0
    %v114 = vadd.f32 0.0, %v113
    %115 = vmatmul.f32.gmra.mxu0 %v76
    %v116 = vpop.f32.mrf.mxu0
    %v117 = vadd.f32 0.0, %v116
    %118 = vmatmul.f32.gmra.mxu0 %v79
    %v119 = vpop.f32.mrf.mxu0
    %v120 = vadd.f32 0.0, %v119
    %121 = vmatmul.f32.gmra.mxu0 %v82
    %v122 = vpop.f32.mrf.mxu0
    %v123 = vadd.f32 0.0, %v122
    %124 = vmatmul.f32.gmra.mxu0 %v85
    %v125 = vpop.f32.mrf.mxu0
    %v126 = vadd.f32 0.0, %v125
    %127 = vmatmul.f32.gmra.mxu0 %v88
    %v128 = vpop.f32.mrf.mxu0
    %v129 = vadd.f32 0.0, %v128
    %130 = vdwg.mxu0
    %vm131 = vcmp.gt.f32.partialorder %v114, 0.0
    %vm132 = vcmp.gt.f32.partialorder %v117, 0.0
    %vm133 = vcmp.gt.f32.partialorder %v120, 0.0
    %vm134 = vcmp.gt.f32.partialorder %v123, 0.0
    %vm135 = vcmp.gt.f32.partialorder %v126, 0.0
    %vm136 = vcmp.gt.f32.partialorder %v129, 0.0
    %v137 = vmul.f32 %v114, 0.2
    %v138 = vmul.f32 %v117, 0.2
    %v139 = vmul.f32 %v120, 0.2
    %v140 = vmul.f32 %v123, 0.2
    %v141 = vmul.f32 %v126, 0.2
    %v142 = vmul.f32 %v129, 0.2
    %v143 = vsel %vm131, %v114, %v137
    %v144 = vsel %vm132, %v117, %v138
    %v145 = vsel %vm133, %v120, %v139
    %v146 = vsel %vm134, %v123, %v140
    %v147 = vsel %vm135, %v126, %v141
    %v148 = vsel %vm136, %v129, %v142
    %vm149 = vcmp.gt.f32.partialorder %v21, 0.0
    %vm150 = vcmp.gt.f32.partialorder %v22, 0.0
    %vm151 = vcmp.gt.f32.partialorder %v23, 0.0
    %vm152 = vcmp.gt.f32.partialorder %v24, 0.0
    %vm153 = vcmp.gt.f32.partialorder %v25, 0.0
    %vm154 = vcmp.gt.f32.partialorder %v26, 0.0
    %v155 = vsel %vm149, %v143, -1e+30
    %v156 = vsel %vm150, %v144, -1e+30
    %v157 = vsel %vm151, %v145, -1e+30
    %v158 = vsel %vm152, %v146, -1e+30
    %v159 = vsel %vm153, %v147, -1e+30
    %v160 = vsel %vm154, %v148, -1e+30
    %vm161 = vcmask 130048
    %v162 = vsel %vm161, %v155, -inf
    %163 = vmax.xlane.f32.xlu0 %v162
    %v164 = vpop.xlane.xlu0 %163
    %v165 = vsel %vm161, %v156, -inf
    %166 = vmax.xlane.f32.xlu0 %v165
    %v167 = vpop.xlane.xlu0 %166
    %v168 = vsel %vm161, %v157, -inf
    %169 = vmax.xlane.f32.xlu0 %v168
    %v170 = vpop.xlane.xlu0 %169
    %v171 = vsel %vm161, %v158, -inf
    %172 = vmax.xlane.f32.xlu0 %v171
    %v173 = vpop.xlane.xlu0 %172
    %v174 = vsel %vm161, %v159, -inf
    %175 = vmax.xlane.f32.xlu0 %v174
    %v176 = vpop.xlane.xlu0 %175
    %v177 = vsel %vm161, %v160, -inf
    %178 = vmax.xlane.f32.xlu0 %v177
    %v179 = vpop.xlane.xlu0 %178
    %v180 = vsub.f32 %v155, %v164
    %v181 = vsub.f32 %v156, %v167
    %v182 = vsub.f32 %v157, %v170
    %v183 = vsub.f32 %v158, %v173
    %v184 = vsub.f32 %v159, %v176
    %v185 = vsub.f32 %v160, %v179
    %v186 = vmul.f32 %v180, 1.442695
    %v187 = vpow.pop %v186
    %v188 = vmul.f32 %v181, 1.442695
    %v189 = vpow.pop %v188
    %v190 = vmul.f32 %v182, 1.442695
    %v191 = vpow.pop %v190
    %v192 = vmul.f32 %v183, 1.442695
    %v193 = vpow.pop %v192
    %v194 = vmul.f32 %v184, 1.442695
    %v195 = vpow.pop %v194
    %v196 = vmul.f32 %v185, 1.442695
    %v197 = vpow.pop %v196
    %v198 = vmul.f32 %v187, %v21
    %v199 = vmul.f32 %v189, %v22
    %v200 = vmul.f32 %v191, %v23
    %v201 = vmul.f32 %v193, %v24
    %v202 = vmul.f32 %v195, %v25
    %v203 = vmul.f32 %v197, %v26
    %v204 = vsel %vm161, %v198, 0.0
    %205 = vadd.xlane.f32.xlu0 %v204
    %v206 = vpop.xlane.xlu0 %205
    %v207 = vsel %vm161, %v199, 0.0
    %208 = vadd.xlane.f32.xlu0 %v207
    %v209 = vpop.xlane.xlu0 %208
    %v210 = vsel %vm161, %v200, 0.0
    %211 = vadd.xlane.f32.xlu0 %v210
    %v212 = vpop.xlane.xlu0 %211
    %v213 = vsel %vm161, %v201, 0.0
    %214 = vadd.xlane.f32.xlu0 %v213
    %v215 = vpop.xlane.xlu0 %214
    %v216 = vsel %vm161, %v202, 0.0
    %217 = vadd.xlane.f32.xlu0 %v216
    %v218 = vpop.xlane.xlu0 %217
    %v219 = vsel %vm161, %v203, 0.0
    %220 = vadd.xlane.f32.xlu0 %v219
    %v221 = vpop.xlane.xlu0 %220
    %v222 = vrcp.pop %v206
    %v223 = vrcp.pop %v209
    %v224 = vrcp.pop %v212
    %v225 = vrcp.pop %v215
    %v226 = vrcp.pop %v218
    %v227 = vrcp.pop %v221
    %v228 = vmul.f32 %v206, %v222
    %v229 = vmul.f32 %v209, %v223
    %v230 = vmul.f32 %v212, %v224
    %v231 = vmul.f32 %v215, %v225
    %v232 = vmul.f32 %v218, %v226
    %v233 = vmul.f32 %v221, %v227
    %v234 = vsub.f32 2.0, %v228
    %v235 = vsub.f32 2.0, %v229
    %v236 = vsub.f32 2.0, %v230
    %v237 = vsub.f32 2.0, %v231
    %v238 = vsub.f32 2.0, %v232
    %v239 = vsub.f32 2.0, %v233
    %v240 = vmul.f32 %v222, %v234
    %v241 = vmul.f32 %v223, %v235
    %v242 = vmul.f32 %v224, %v236
    %v243 = vmul.f32 %v225, %v237
    %v244 = vmul.f32 %v226, %v238
    %v245 = vmul.f32 %v227, %v239
    %v246 = vmul.f32 %v198, %v240
    %v247 = vmul.f32 %v199, %v241
    %v248 = vmul.f32 %v200, %v242
    %v249 = vmul.f32 %v201, %v243
    %v250 = vmul.f32 %v202, %v244
    %v251 = vmul.f32 %v203, %v245
    %v252 = vld [vmem:[%s4] sm:$0x1]
    %vm253 = vcmask 16384
    %v254 = vsel %vm253, %v252, -inf
    %255 = vmax.xlane.f32.xlu0 %v254
    %v256 = vpop.xlane.xlu0 %255
    %v257 = vsub.f32 %v252, %v256
    %v258 = vmul.f32 %v257, 1.442695
    %v259 = vpow.pop %v258
    %v260 = vsel %vm253, %v259, 0.0
    %261 = vadd.xlane.f32.xlu0 %v260
    %v262 = vpop.xlane.xlu0 %261
    %v263 = vrcp.pop %v262
    %v264 = vmul.f32 %v262, %v263
    %v265 = vsub.f32 2.0, %v264
    %v266 = vmul.f32 %v263, %v265
    %v267 = vmul.f32 %v259, %v266
    %v269 = vperm.slane %v267, 0
    %270 = vset.pattern.permute.xlu0 0
    %271 = vperm.xlu0 %270, %v269
    %v272 = vpop.permute.xlu0 %271
    %v274 = vmul.f32 %v246, %v272
    %v275 = vmul.f32 %v247, %v272
    %276 = vset.pattern.permute.xlu0 1
    %277 = vperm.xlu0 %276, %v269
    %v278 = vpop.permute.xlu0 %277
    %v280 = vmul.f32 %v248, %v278
    %v281 = vmul.f32 %v249, %v278
    %v282 = vadd.f32 %v274, %v280
    %v283 = vadd.f32 %v275, %v281
    %284 = vset.pattern.permute.xlu0 2
    %285 = vperm.xlu0 %284, %v269
    %v286 = vpop.permute.xlu0 %285
    %v288 = vmul.f32 %v250, %v286
    %v289 = vmul.f32 %v251, %v286
    %v290 = vadd.f32 %v282, %v288
    %v291 = vadd.f32 %v283, %v289
    %vm292 = vcmp.gt.f32.partialorder %v290, 0.0
    %vm293 = vcmp.gt.f32.partialorder %v291, 0.0
    %v294 = vsel %vm292, %v290, -9e+15
    %v295 = vsel %vm293, %v291, -9e+15
    %v296 = vsel %vm161, %v294, -inf
    %297 = vmax.xlane.f32.xlu0 %v296
    %v298 = vpop.xlane.xlu0 %297
    %v299 = vsel %vm161, %v295, -inf
    %300 = vmax.xlane.f32.xlu0 %v299
    %v301 = vpop.xlane.xlu0 %300
    %v302 = vsub.f32 %v294, %v298
    %v303 = vsub.f32 %v295, %v301
    %v304 = vmul.f32 %v302, 1.442695
    %v305 = vpow.pop %v304
    %v306 = vmul.f32 %v303, 1.442695
    %v307 = vpow.pop %v306
    %v308 = vsel %vm161, %v305, 0.0
    %309 = vadd.xlane.f32.xlu0 %v308
    %v310 = vpop.xlane.xlu0 %309
    %v311 = vsel %vm161, %v307, 0.0
    %312 = vadd.xlane.f32.xlu0 %v311
    %v313 = vpop.xlane.xlu0 %312
    %v314 = vrcp.pop %v310
    %v315 = vrcp.pop %v313
    %v316 = vmul.f32 %v310, %v314
    %v317 = vmul.f32 %v313, %v315
    %v318 = vsub.f32 2.0, %v316
    %v319 = vsub.f32 2.0, %v317
    %v320 = vmul.f32 %v314, %v318
    %v321 = vmul.f32 %v315, %v319
    %v322 = vmul.f32 %v305, %v320
    %v323 = vmul.f32 %v307, %v321
    %v325 = vsel %vm161, %v322, 0
    %v328 = vsel %vm161, %v323, 0
    %330 = vmatpush.msra.mxu0 0.0
    %331 = vmatpush.msra.mxu0 0.0
    %332 = vmatpush.msra.mxu0 0.0
    %333 = vmatpush.msra.mxu0 0.0
    %334 = vmatpush.msra.mxu0 0.0
    %335 = vmatpush.msra.mxu0 0.0
    %336 = vmatpush.msra.mxu0 0.0
    %337 = vmatpush.msra.mxu0 0.0
    %338 = vmatpush.msra.mxu0 0.0
    %339 = vmatpush.msra.mxu0 0.0
    %340 = vmatpush.msra.mxu0 0.0
    %341 = vmatpush.msra.mxu0 0.0
    %342 = vmatpush.msra.mxu0 0.0
    %343 = vmatpush.msra.mxu0 0.0
    %344 = vmatpush.msra.mxu0 %v63
    %345 = vmatpush.msra.mxu0 %v60
    %346 = vmatmul.f32.gmra.mxu0 %v325
    %v347 = vpop.f32.mrf.mxu0
    %v348 = vadd.f32 0.0, %v347
    %349 = vmatmul.f32.gmra.mxu0 %v328
    %v350 = vpop.f32.mrf.mxu0
    %v351 = vadd.f32 0.0, %v350
    %352 = vdwg.mxu0
    %v353 = vmax.f32 %v348, 0.0
    %v354 = vmax.f32 %v351, 0.0
    %vm355 = vcmask 261120
    %356 = vst.msk [vmem:[#allocation2] sm:$0xff] %vm355, %v353
    %357 = vst.msk [vmem:[#allocation2 + $0x8] sm:$0xff] %vm355, %v354
    %s358 = scalar_lea.vmem %s0, 16
    %v359 = vld [vmem:[%s358] sm:$0xff]
    %v360 = vld [vmem:[%s358 + $0x8] sm:$0xff]
    %s361 = scalar_lea.vmem %s1, 16
    %v362 = vld [vmem:[%s361] sm:$0xff]
    %v363 = vld [vmem:[%s361 + $0x8] sm:$0x1]
    %v365 = vsel %vm31, %v359, 0
    %v368 = vsel %vm31, %v360, 0
    %v371 = vsel %vm38, %v363, 0
    %373 = vmatpush.msra.mxu0 0.0
    %374 = vmatpush.msra.mxu0 0.0
    %375 = vmatpush.msra.mxu0 0.0
    %376 = vmatpush.msra.mxu0 0.0
    %377 = vmatpush.msra.mxu0 0.0
    %378 = vmatpush.msra.mxu0 0.0
    %379 = vmatpush.msra.mxu0 0.0
    %380 = vmatpush.msra.mxu0 0.0
    %381 = vmatpush.msra.mxu0 0.0
    %382 = vmatpush.msra.mxu0 0.0
    %383 = vmatpush.msra.mxu0 0.0
    %384 = vmatpush.msra.mxu0 0.0
    %385 = vmatpush.msra.mxu0 0.0
    %386 = vmatpush.msra.mxu0 0.0
    %387 = vmatpush.msra.mxu0 %v371
    %388 = vmatpush.msra.mxu0 %v362
    %389 = vmatmul.f32.gmra.mxu0 %v365
    %v390 = vpop.f32.mrf.mxu0
    %v391 = vadd.f32 0.0, %v390
    %392 = vmatmul.f32.gmra.mxu0 %v368
    %v393 = vpop.f32.mrf.mxu0
    %v394 = vadd.f32 0.0, %v393
    %395 = vdwg.mxu0
    %s396 = scalar_lea.vmem %s2, 48
    %v397 = vld [vmem:[%s396] sm:$0xff]
    %v398 = vld [vmem:[%s396 + $0x8] sm:$0xff]
    %v399 = vld [vmem:[%s396 + $0x10] sm:$0xff]
    %v400 = vld [vmem:[%s396 + $0x18] sm:$0xff]
    %v401 = vld [vmem:[%s396 + $0x20] sm:$0xff]
    %v402 = vld [vmem:[%s396 + $0x28] sm:$0xff]
    %v404 = vsel %vm71, %v397, 0
    %v407 = vsel %vm71, %v398, 0
    %v410 = vsel %vm71, %v399, 0
    %v413 = vsel %vm71, %v400, 0
    %v416 = vsel %vm71, %v401, 0
    %v419 = vsel %vm71, %v402, 0
    %v422 = vsel %vm71, %v391, 0
    %v425 = vsel %vm71, %v394, 0
    %427 = vmatpush.xpose.msra.mxu0 0.0
    %428 = vmatpush.xpose.msra.mxu0 0.0
    %429 = vmatpush.xpose.msra.mxu0 0.0
    %430 = vmatpush.xpose.msra.mxu0 0.0
    %431 = vmatpush.xpose.msra.mxu0 0.0
    %432 = vmatpush.xpose.msra.mxu0 0.0
    %433 = vmatpush.xpose.msra.mxu0 0.0
    %434 = vmatpush.xpose.msra.mxu0 0.0
    %435 = vmatpush.xpose.msra.mxu0 0.0
    %436 = vmatpush.xpose.msra.mxu0 0.0
    %437 = vmatpush.xpose.msra.mxu0 0.0
    %438 = vmatpush.xpose.msra.mxu0 0.0
    %439 = vmatpush.xpose.msra.mxu0 0.0
    %440 = vmatpush.xpose.msra.mxu0 0.0
    %441 = vmatpush.xpose.msra.mxu0 %v425
    %442 = vmatpush.xpose.msra.mxu0 %v422
    %443 = vmatmul.f32.gmra.mxu0 %v404
    %v444 = vpop.f32.mrf.mxu0
    %v445 = vadd.f32 0.0, %v444
    %446 = vmatmul.f32.gmra.mxu0 %v407
    %v447 = vpop.f32.mrf.mxu0
    %v448 = vadd.f32 0.0, %v447
    %449 = vmatmul.f32.gmra.mxu0 %v410
    %v450 = vpop.f32.mrf.mxu0
    %v451 = vadd.f32 0.0, %v450
    %452 = vmatmul.f32.gmra.mxu0 %v413
    %v453 = vpop.f32.mrf.mxu0
    %v454 = vadd.f32 0.0, %v453
    %455 = vmatmul.f32.gmra.mxu0 %v416
    %v456 = vpop.f32.mrf.mxu0
    %v457 = vadd.f32 0.0, %v456
    %458 = vmatmul.f32.gmra.mxu0 %v419
    %v459 = vpop.f32.mrf.mxu0
    %v460 = vadd.f32 0.0, %v459
    %461 = vdwg.mxu0
    %vm462 = vcmp.gt.f32.partialorder %v445, 0.0
    %vm463 = vcmp.gt.f32.partialorder %v448, 0.0
    %vm464 = vcmp.gt.f32.partialorder %v451, 0.0
    %vm465 = vcmp.gt.f32.partialorder %v454, 0.0
    %vm466 = vcmp.gt.f32.partialorder %v457, 0.0
    %vm467 = vcmp.gt.f32.partialorder %v460, 0.0
    %v468 = vmul.f32 %v445, 0.2
    %v469 = vmul.f32 %v448, 0.2
    %v470 = vmul.f32 %v451, 0.2
    %v471 = vmul.f32 %v454, 0.2
    %v472 = vmul.f32 %v457, 0.2
    %v473 = vmul.f32 %v460, 0.2
    %v474 = vsel %vm462, %v445, %v468
    %v475 = vsel %vm463, %v448, %v469
    %v476 = vsel %vm464, %v451, %v470
    %v477 = vsel %vm465, %v454, %v471
    %v478 = vsel %vm466, %v457, %v472
    %v479 = vsel %vm467, %v460, %v473
    %v480 = vsel %vm149, %v474, -1e+30
    %v481 = vsel %vm150, %v475, -1e+30
    %v482 = vsel %vm151, %v476, -1e+30
    %v483 = vsel %vm152, %v477, -1e+30
    %v484 = vsel %vm153, %v478, -1e+30
    %v485 = vsel %vm154, %v479, -1e+30
    %v486 = vsel %vm161, %v480, -inf
    %487 = vmax.xlane.f32.xlu0 %v486
    %v488 = vpop.xlane.xlu0 %487
    %v489 = vsel %vm161, %v481, -inf
    %490 = vmax.xlane.f32.xlu0 %v489
    %v491 = vpop.xlane.xlu0 %490
    %v492 = vsel %vm161, %v482, -inf
    %493 = vmax.xlane.f32.xlu0 %v492
    %v494 = vpop.xlane.xlu0 %493
    %v495 = vsel %vm161, %v483, -inf
    %496 = vmax.xlane.f32.xlu0 %v495
    %v497 = vpop.xlane.xlu0 %496
    %v498 = vsel %vm161, %v484, -inf
    %499 = vmax.xlane.f32.xlu0 %v498
    %v500 = vpop.xlane.xlu0 %499
    %v501 = vsel %vm161, %v485, -inf
    %502 = vmax.xlane.f32.xlu0 %v501
    %v503 = vpop.xlane.xlu0 %502
    %v504 = vsub.f32 %v480, %v488
    %v505 = vsub.f32 %v481, %v491
    %v506 = vsub.f32 %v482, %v494
    %v507 = vsub.f32 %v483, %v497
    %v508 = vsub.f32 %v484, %v500
    %v509 = vsub.f32 %v485, %v503
    %v510 = vmul.f32 %v504, 1.442695
    %v511 = vpow.pop %v510
    %v512 = vmul.f32 %v505, 1.442695
    %v513 = vpow.pop %v512
    %v514 = vmul.f32 %v506, 1.442695
    %v515 = vpow.pop %v514
    %v516 = vmul.f32 %v507, 1.442695
    %v517 = vpow.pop %v516
    %v518 = vmul.f32 %v508, 1.442695
    %v519 = vpow.pop %v518
    %v520 = vmul.f32 %v509, 1.442695
    %v521 = vpow.pop %v520
    %v522 = vmul.f32 %v511, %v21
    %v523 = vmul.f32 %v513, %v22
    %v524 = vmul.f32 %v515, %v23
    %v525 = vmul.f32 %v517, %v24
    %v526 = vmul.f32 %v519, %v25
    %v527 = vmul.f32 %v521, %v26
    %v528 = vsel %vm161, %v522, 0.0
    %529 = vadd.xlane.f32.xlu0 %v528
    %v530 = vpop.xlane.xlu0 %529
    %v531 = vsel %vm161, %v523, 0.0
    %532 = vadd.xlane.f32.xlu0 %v531
    %v533 = vpop.xlane.xlu0 %532
    %v534 = vsel %vm161, %v524, 0.0
    %535 = vadd.xlane.f32.xlu0 %v534
    %v536 = vpop.xlane.xlu0 %535
    %v537 = vsel %vm161, %v525, 0.0
    %538 = vadd.xlane.f32.xlu0 %v537
    %v539 = vpop.xlane.xlu0 %538
    %v540 = vsel %vm161, %v526, 0.0
    %541 = vadd.xlane.f32.xlu0 %v540
    %v542 = vpop.xlane.xlu0 %541
    %v543 = vsel %vm161, %v527, 0.0
    %544 = vadd.xlane.f32.xlu0 %v543
    %v545 = vpop.xlane.xlu0 %544
    %v546 = vrcp.pop %v530
    %v547 = vrcp.pop %v533
    %v548 = vrcp.pop %v536
    %v549 = vrcp.pop %v539
    %v550 = vrcp.pop %v542
    %v551 = vrcp.pop %v545
    %v552 = vmul.f32 %v530, %v546
    %v553 = vmul.f32 %v533, %v547
    %v554 = vmul.f32 %v536, %v548
    %v555 = vmul.f32 %v539, %v549
    %v556 = vmul.f32 %v542, %v550
    %v557 = vmul.f32 %v545, %v551
    %v558 = vsub.f32 2.0, %v552
    %v559 = vsub.f32 2.0, %v553
    %v560 = vsub.f32 2.0, %v554
    %v561 = vsub.f32 2.0, %v555
    %v562 = vsub.f32 2.0, %v556
    %v563 = vsub.f32 2.0, %v557
    %v564 = vmul.f32 %v546, %v558
    %v565 = vmul.f32 %v547, %v559
    %v566 = vmul.f32 %v548, %v560
    %v567 = vmul.f32 %v549, %v561
    %v568 = vmul.f32 %v550, %v562
    %v569 = vmul.f32 %v551, %v563
    %v570 = vmul.f32 %v522, %v564
    %v571 = vmul.f32 %v523, %v565
    %v572 = vmul.f32 %v524, %v566
    %v573 = vmul.f32 %v525, %v567
    %v574 = vmul.f32 %v526, %v568
    %v575 = vmul.f32 %v527, %v569
    %s576 = scalar_lea.vmem %s4, 1
    %v577 = vld [vmem:[%s576] sm:$0x1]
    %v578 = vsel %vm253, %v577, -inf
    %579 = vmax.xlane.f32.xlu0 %v578
    %v580 = vpop.xlane.xlu0 %579
    %v581 = vsub.f32 %v577, %v580
    %v582 = vmul.f32 %v581, 1.442695
    %v583 = vpow.pop %v582
    %v584 = vsel %vm253, %v583, 0.0
    %585 = vadd.xlane.f32.xlu0 %v584
    %v586 = vpop.xlane.xlu0 %585
    %v587 = vrcp.pop %v586
    %v588 = vmul.f32 %v586, %v587
    %v589 = vsub.f32 2.0, %v588
    %v590 = vmul.f32 %v587, %v589
    %v591 = vmul.f32 %v583, %v590
    %v593 = vperm.slane %v591, 0
    %594 = vset.pattern.permute.xlu0 0
    %595 = vperm.xlu0 %594, %v593
    %v596 = vpop.permute.xlu0 %595
    %v598 = vmul.f32 %v570, %v596
    %v599 = vmul.f32 %v571, %v596
    %600 = vset.pattern.permute.xlu0 1
    %601 = vperm.xlu0 %600, %v593
    %v602 = vpop.permute.xlu0 %601
    %v604 = vmul.f32 %v572, %v602
    %v605 = vmul.f32 %v573, %v602
    %v606 = vadd.f32 %v598, %v604
    %v607 = vadd.f32 %v599, %v605
    %608 = vset.pattern.permute.xlu0 2
    %609 = vperm.xlu0 %608, %v593
    %v610 = vpop.permute.xlu0 %609
    %v612 = vmul.f32 %v574, %v610
    %v613 = vmul.f32 %v575, %v610
    %v614 = vadd.f32 %v606, %v612
    %v615 = vadd.f32 %v607, %v613
    %vm616 = vcmp.gt.f32.partialorder %v614, 0.0
    %vm617 = vcmp.gt.f32.partialorder %v615, 0.0
    %v618 = vsel %vm616, %v614, -9e+15
    %v619 = vsel %vm617, %v615, -9e+15
    %v620 = vsel %vm161, %v618, -inf
    %621 = vmax.xlane.f32.xlu0 %v620
    %v622 = vpop.xlane.xlu0 %621
    %v623 = vsel %vm161, %v619, -inf
    %624 = vmax.xlane.f32.xlu0 %v623
    %v625 = vpop.xlane.xlu0 %624
    %v626 = vsub.f32 %v618, %v622
    %v627 = vsub.f32 %v619, %v625
    %v628 = vmul.f32 %v626, 1.442695
    %v629 = vpow.pop %v628
    %v630 = vmul.f32 %v627, 1.442695
    %v631 = vpow.pop %v630
    %v632 = vsel %vm161, %v629, 0.0
    %633 = vadd.xlane.f32.xlu0 %v632
    %v634 = vpop.xlane.xlu0 %633
    %v635 = vsel %vm161, %v631, 0.0
    %636 = vadd.xlane.f32.xlu0 %v635
    %v637 = vpop.xlane.xlu0 %636
    %v638 = vrcp.pop %v634
    %v639 = vrcp.pop %v637
    %v640 = vmul.f32 %v634, %v638
    %v641 = vmul.f32 %v637, %v639
    %v642 = vsub.f32 2.0, %v640
    %v643 = vsub.f32 2.0, %v641
    %v644 = vmul.f32 %v638, %v642
    %v645 = vmul.f32 %v639, %v643
    %v646 = vmul.f32 %v629, %v644
    %v647 = vmul.f32 %v631, %v645
    %v649 = vsel %vm161, %v646, 0
    %v652 = vsel %vm161, %v647, 0
    %654 = vmatpush.msra.mxu0 0.0
    %655 = vmatpush.msra.mxu0 0.0
    %656 = vmatpush.msra.mxu0 0.0
    %657 = vmatpush.msra.mxu0 0.0
    %658 = vmatpush.msra.mxu0 0.0
    %659 = vmatpush.msra.mxu0 0.0
    %660 = vmatpush.msra.mxu0 0.0
    %661 = vmatpush.msra.mxu0 0.0
    %662 = vmatpush.msra.mxu0 0.0
    %663 = vmatpush.msra.mxu0 0.0
    %664 = vmatpush.msra.mxu0 0.0
    %665 = vmatpush.msra.mxu0 0.0
    %666 = vmatpush.msra.mxu0 0.0
    %667 = vmatpush.msra.mxu0 0.0
    %668 = vmatpush.msra.mxu0 %v394
    %669 = vmatpush.msra.mxu0 %v391
    %670 = vmatmul.f32.gmra.mxu0 %v649
    %v671 = vpop.f32.mrf.mxu0
    %v672 = vadd.f32 0.0, %v671
    %673 = vmatmul.f32.gmra.mxu0 %v652
    %v674 = vpop.f32.mrf.mxu0
    %v675 = vadd.f32 0.0, %v674
    %676 = vdwg.mxu0
    %v677 = vmax.f32 %v672, 0.0
    %v678 = vmax.f32 %v675, 0.0
    %s679 = scalar_lea.vmem [#allocation2], 16
    %680 = vst.msk [vmem:[%s679] sm:$0xff] %vm355, %v677
    %681 = vst.msk [vmem:[%s679 + $0x8] sm:$0xff] %vm355, %v678
    // Predicated region
    $region22: #{tpu_custom_call.1} parent=1 // pred_check
      _
    $region23: #{tpu_custom_call.1} parent=1 // pred_check_branch
      %683 = sbr.rel (0) target = $region25
    $region24: #{tpu_custom_call.1} parent=1 // pred_region
      %685 = vsyncadd [#allocation3], 0
      %s686 = sshll.u32 [#allocation2], 4
      %s687 = int_to_ptr.vmem [resolvable:$true] %s686
      %s688 = sshll.u32 %s5, 4
      %s689 = int_to_ptr.hbm [resolvable:$true] %s688
      %694 = dma.vmem_to_hbm [thread:$0]  %s687, 512, %s689, [#allocation3], 128, 128, 8
    $region25: #{tpu_custom_call.1} parent=1 // pred_fallthru
      _
    // Predicated region
    $region26: #{tpu_custom_call.1} parent=1 // pred_check
      _
    $region27: #{tpu_custom_call.1} parent=1 // pred_check_branch
      %696 = sbr.rel (0) target = $region29
    $region28: #{tpu_custom_call.1} parent=1 // pred_region
      %698 = dma.done [#allocation3], 512
    $region29: #{tpu_custom_call.1} parent=1 // pred_fallthru
      _
    %699 = vsyncpa [#allocation3], 1

</llo_original>
